<compile_context>
chip_gen: v7x
topology: tpu7x:2x2x1
jax: 0.10.0
libtpu: 0.0.40
codegen_flags: <defaults>
</compile_context>

<pallas_src>
import functools

import jax
import jax.numpy as jnp
import numpy as np
from jax import lax
from jax.experimental import pallas as pl
from jax.experimental.pallas import tpu as pltpu

n_classes = 2
_B_BLK = 8        # batch rows per grid step (sublane granule)
_LANES = 128      # lane granule for the padded logits store


def _gru_gate_update(g, h_prev, m, not_m, H):
    """g: (B, 4H) pre-activations laid out [r | z | n_x | n_h]."""
    r = jax.nn.sigmoid(g[:, 0 * H:1 * H])
    z = jax.nn.sigmoid(g[:, 1 * H:2 * H])
    n = jnp.tanh(g[:, 2 * H:3 * H] + r * g[:, 3 * H:4 * H])
    h_cand = (1.0 - z) * n + z * h_prev
    # packed-sequence semantics: hidden freezes once t >= lengths[b]
    return m * h_cand + not_m * h_prev


def _gru_kernel(len_ref, gi0_ref, w0r_ref, b0r_ref, wdeep_ref, bdeep_ref,
                wout_ref, bout_ref, out_ref, *, n_layers, hidden_dim):
    H = hidden_dim
    L = n_layers
    T, BB, _ = gi0_ref.shape

    lengths = len_ref[...]                       # (BB, 1) int32
    w0_rec = w0r_ref[...]                        # (H, 4H)  bf16
    b0_rec = b0r_ref[...]                        # (1, 4H)  f32
    w_deep = wdeep_ref[...]                      # (max(L-1,1), 2H, 4H) bf16
    b_deep = bdeep_ref[...]                      # (max(L-1,1), 1, 4H)  f32

    def step(t, hs):
        m = (t < lengths).astype(jnp.float32)    # (BB, 1) validity mask
        not_m = 1.0 - m

        # Layer 0: gi0[t] (input projection + bias) was hoisted out of the
        # recurrence; only the recurrent matmul stays on the serial path.
        g0 = (gi0_ref[t]
              + jnp.dot(hs[0].astype(jnp.bfloat16), w0_rec,
                        preferred_element_type=jnp.float32)
              + b0_rec)
        h_new = _gru_gate_update(g0, hs[0], m, not_m, H)
        new_hs = [h_new]
        x_l = h_new

        # Deeper layers: one fused [x | h] @ (2H, 4H) matmul per layer.
        for l in range(1, L):
            xin = jnp.concatenate([x_l, hs[l]], axis=1).astype(jnp.bfloat16)
            g = (jnp.dot(xin, w_deep[l - 1],
                         preferred_element_type=jnp.float32) + b_deep[l - 1])
            h_new = _gru_gate_update(g, hs[l], m, not_m, H)
            new_hs.append(h_new)
            x_l = h_new
        return tuple(new_hs)

    h_init = tuple(jnp.zeros((BB, H), jnp.float32) for _ in range(L))
    h_final = lax.fori_loop(0, T, step, h_init)

    # hidden[-1] -> dropout (eval mode: identity) -> Linear (lane-padded store).
    # TODO(synk): training-mode (stochastic) dropout intentionally omitted.
    out_ref[...] = (jnp.dot(h_final[L - 1].astype(jnp.bfloat16), wout_ref[...],
                            preferred_element_type=jnp.float32)
                    + bout_ref[...])


def basic_gru_forward(tokens, lengths, params, *, n_layers, hidden_dim,
                      num_classes):
    """tokens: (B, T) int32, lengths: (B,) int32 -> logits (B, num_classes)."""
    H, L = hidden_dim, n_layers
    B, T = tokens.shape
    emb = params["embed"]
    E = emb.shape[1]
    G = 4 * H
    bf16 = jnp.bfloat16

    B_pad = ((B + _B_BLK - 1) // _B_BLK) * _B_BLK
    C_pad = ((num_classes + _LANES - 1) // _LANES) * _LANES

    # ---- glue (plain JAX): embedding gather, time-major bf16 activations ----
    x = jnp.take(emb, tokens, axis=0)                        # (B, T, E)
    x = jnp.transpose(x, (1, 0, 2)).astype(bf16)             # (T, B, E)
    x = jnp.pad(x, ((0, 0), (0, B_pad - B), (0, 0)))         # pad batch to 8
    lengths2d = jnp.pad(lengths.astype(jnp.int32),
                        (0, B_pad - B)).reshape(B_pad, 1)    # padded rows -> 0

    # ---- repack weights into fused, lane-aligned layouts ----
    w_ih0 = params["w_ih0"]          # (3H, E)   PyTorch layout, gates [r|z|n]
    w_ih_rest = params["w_ih_rest"]  # (max(L-1,1), 3H, H)
    w_hh = params["w_hh"]            # (L, 3H, H)
    b_ih = params["b_ih"]            # (L, 3H)
    b_hh = params["b_hh"]            # (L, 3H)

    def g3(w):                       # (3H, X) -> Wr, Wz, Wn each (H, X)
        return w[:H], w[H:2 * H], w[2 * H:]

    zHH = jnp.zeros((H, H), jnp.float32)
    zH = jnp.zeros((H,), jnp.float32)

    # Layer 0, non-recurrent part (hoisted): one big (T*B, E)x(E, 4H) matmul.
    wr, wz, wn = g3(w_ih0)
    w0_pre = jnp.concatenate([wr.T, wz.T, wn.T, jnp.zeros((E, H))], axis=1)
    b0_pre = jnp.concatenate([b_ih[0, :H], b_ih[0, H:2 * H], b_ih[0, 2 * H:],
                              zH])
    gi0 = jnp.dot(x.reshape(T * B_pad, E), w0_pre.astype(bf16),
                  preferred_element_type=jnp.float32) + b0_pre[None, :]
    gi0 = gi0.reshape(T, B_pad, G)                           # (T, B_pad, 4H)

    # Layer 0, recurrent part.
    ur, uz, un = g3(w_hh[0])
    w0_rec = jnp.concatenate([ur.T, uz.T, zHH, un.T], axis=1).astype(bf16)
    b0_rec = jnp.concatenate(
        [b_hh[0, :H], b_hh[0, H:2 * H], zH, b_hh[0, 2 * H:]])[None, :]

    # Layers 1..L-1: fused [x | h] weights.
    wd, bd = [], []
    for l in range(1, L):
        wir, wiz, win = g3(w_ih_rest[l - 1])
        uhr, uhz, uhn = g3(w_hh[l])
        top = jnp.concatenate([wir.T, wiz.T, win.T, zHH], axis=1)   # (H, 4H)
        bot = jnp.concatenate([uhr.T, uhz.T, zHH, uhn.T], axis=1)   # (H, 4H)
        wd.append(jnp.concatenate([top, bot], axis=0))              # (2H, 4H)
        bd.append(jnp.concatenate([b_ih[l, :H] + b_hh[l, :H],
                                   b_ih[l, H:2 * H] + b_hh[l, H:2 * H],
                                   b_ih[l, 2 * H:],
                                   b_hh[l, 2 * H:]])[None, :])
    if not wd:                                   # n_layers == 1: unused dummy
        wd = [jnp.zeros((2 * H, G), jnp.float32)]
        bd = [jnp.zeros((1, G), jnp.float32)]
    w_deep = jnp.stack(wd).astype(bf16)          # (max(L-1,1), 2H, 4H)
    b_deep = jnp.stack(bd)                       # (max(L-1,1), 1, 4H)
    L1 = w_deep.shape[0]

    # Classifier head, padded to a lane-dense 128-wide store.
    w_out_p = jnp.zeros((H, C_pad), jnp.float32)
    w_out_p = w_out_p.at[:, :num_classes].set(params["w_out"].T).astype(bf16)
    b_out_p = jnp.zeros((1, C_pad), jnp.float32)
    b_out_p = b_out_p.at[0, :num_classes].set(params["b_out"])

    kernel = functools.partial(_gru_kernel, n_layers=L, hidden_dim=H)

    grid_spec = pltpu.PrefetchScalarGridSpec(
        num_scalar_prefetch=0,
        grid=(B_pad // _B_BLK,),                              # batch blocks
        in_specs=[
            pl.BlockSpec((_B_BLK, 1), lambda b: (b, 0)),        # lengths
            pl.BlockSpec((T, _B_BLK, G), lambda b: (0, b, 0)),  # hoisted gi0
            pl.BlockSpec((H, G), lambda b: (0, 0)),             # resident wgts
            pl.BlockSpec((1, G), lambda b: (0, 0)),
            pl.BlockSpec((L1, 2 * H, G), lambda b: (0, 0, 0)),
            pl.BlockSpec((L1, 1, G), lambda b: (0, 0, 0)),
            pl.BlockSpec((H, C_pad), lambda b: (0, 0)),
            pl.BlockSpec((1, C_pad), lambda b: (0, 0)),
        ],
        out_specs=pl.BlockSpec((_B_BLK, C_pad), lambda b: (b, 0)),
    )

    out = pl.pallas_call(
        kernel,
        out_shape=jax.ShapeDtypeStruct((B_pad, C_pad), jnp.float32),
        grid_spec=grid_spec,
        # Batch blocks are independent -> "parallel" lets v7x shard the grid
        # across its two TensorCores (no-op on v5e/v6e). At realistic H, set
        # vmem_limit_bytes here and single-buffer the resident weights.
        compiler_params=pltpu.CompilerParams(
            dimension_semantics=("parallel",)),
    )(lengths2d, gi0, w0_rec, b0_rec, w_deep, b_deep, w_out_p, b_out_p)

    return out[:B, :num_classes]


def init_params(key, n_layers, hidden_dim, n_vocab, embed_dim, num_classes):
    """Synthetic params in PyTorch nn.GRU / nn.Linear convention ([r|z|n])."""
    H, E, L = hidden_dim, embed_dim, n_layers
    k = 1.0 / np.sqrt(H)
    keys = jax.random.split(key, 8)
    n_rest = max(L - 1, 1)
    return dict(
        embed=jax.random.normal(keys[0], (n_vocab, E), jnp.float32),
        w_ih0=jax.random.uniform(keys[1], (3 * H, E), jnp.float32, -k, k),
        w_ih_rest=jax.random.uniform(keys[2], (n_rest, 3 * H, H),
                                     jnp.float32, -k, k),
        w_hh=jax.random.uniform(keys[3], (L, 3 * H, H), jnp.float32, -k, k),
        b_ih=jax.random.uniform(keys[4], (L, 3 * H), jnp.float32, -k, k),
        b_hh=jax.random.uniform(keys[5], (L, 3 * H), jnp.float32, -k, k),
        w_out=jax.random.uniform(keys[6], (num_classes, H),
                                 jnp.float32, -k, k),
        b_out=jax.random.uniform(keys[7], (num_classes,), jnp.float32, -k, k),
    )


def reference_forward(tokens, lengths, params, *, n_layers, hidden_dim):
    """Pure-JAX reference mirroring PyTorch's packed GRU + Linear (eval mode),
    with the kernel's mixed-precision policy (bf16 matmuls, f32 accumulation
    and f32 elementwise gate math)."""
    H, L = hidden_dim, n_layers
    B, T = tokens.shape
    bf = jnp.bfloat16
    x_seq = jnp.take(params["embed"], tokens, axis=0).astype(bf)   # (B, T, E)
    h = [jnp.zeros((B, H), jnp.float32) for _ in range(L)]
    for t in range(T):
        m = (t < lengths).astype(jnp.float32)[:, None]
        x = x_seq[:, t, :]
        for l in range(L):
            w_ih = params["w_ih0"] if l == 0 else params["w_ih_rest"][l - 1]
            gi = jnp.dot(x.astype(bf), w_ih.T.astype(bf),
                         preferred_element_type=jnp.float32) + params["b_ih"][l]
            gh = jnp.dot(h[l].astype(bf), params["w_hh"][l].T.astype(bf),
                         preferred_element_type=jnp.float32) + params["b_hh"][l]
            r = jax.nn.sigmoid(gi[:, :H] + gh[:, :H])
            z = jax.nn.sigmoid(gi[:, H:2 * H] + gh[:, H:2 * H])
            n = jnp.tanh(gi[:, 2 * H:] + r * gh[:, 2 * H:])
            h_cand = (1.0 - z) * n + z * h[l]
            h[l] = m * h_cand + (1.0 - m) * h[l]
            x = h[l]
    return (jnp.dot(h[L - 1].astype(bf), params["w_out"].T.astype(bf),
                    preferred_element_type=jnp.float32)
            + params["b_out"][None, :])


if __name__ == "__main__":
    n_layers, hidden_dim, n_vocab, embed_dim = 2, 32, 50, 16
    B, T = 2, 8

    key = jax.random.PRNGKey(0)
    pkey, tkey = jax.random.split(key)
    params = init_params(pkey, n_layers, hidden_dim, n_vocab, embed_dim,
                         n_classes)
    tokens = jax.random.randint(tkey, (B, T), 0, n_vocab, dtype=jnp.int32)
    lengths = jnp.array([8, 5], dtype=jnp.int32)   # enforce_sorted=False

    logits = basic_gru_forward(tokens, lengths, params, n_layers=n_layers,
                               hidden_dim=hidden_dim, num_classes=n_classes)
    logits = jax.block_until_ready(logits)

    ref = reference_forward(tokens, lengths, params, n_layers=n_layers,
                            hidden_dim=hidden_dim)
    np.testing.assert_allclose(np.asarray(logits), np.asarray(ref),
                               rtol=1e-2, atol=1e-2)
    print("KERNEL_OK")
</pallas_src>

<mosaic_0001>
module attributes {stable_mosaic.version = 11 : i64} {
  func.func @_gru_kernel(%arg0: i32, %arg1: memref<8x1xi32, #tpu.memory_space<vmem>>, %arg2: memref<8x8x128xf32, #tpu.memory_space<vmem>>, %arg3: memref<32x128xbf16, #tpu.memory_space<vmem>>, %arg4: memref<1x128xf32, #tpu.memory_space<vmem>>, %arg5: memref<1x64x128xbf16, #tpu.memory_space<vmem>>, %arg6: memref<1x1x128xf32, #tpu.memory_space<vmem>>, %arg7: memref<32x128xbf16, #tpu.memory_space<vmem>>, %arg8: memref<1x128xf32, #tpu.memory_space<vmem>>, %arg9: memref<8x128xf32, #tpu.memory_space<vmem>>) attributes {dimension_semantics = [#tpu.dimension_semantics<parallel>], iteration_bounds = array<i64: 1>, scalar_prefetch = 0 : i64, scratch_operands = 0 : i64, tpu.core_type = #tpu.core_type<tc>, window_params = [{transform_indices = @transform_0, window_bounds = array<i64: 8, 1>}, {transform_indices = @transform_1, window_bounds = array<i64: 8, 8, 128>}, {pipeline_mode = #tpu.pipeline_mode<synchronous>, transform_indices = @transform_2, window_bounds = array<i64: 32, 128>}, {pipeline_mode = #tpu.pipeline_mode<synchronous>, transform_indices = @transform_3, window_bounds = array<i64: 1, 128>}, {pipeline_mode = #tpu.pipeline_mode<synchronous>, transform_indices = @transform_4, window_bounds = array<i64: 1, 64, 128>}, {pipeline_mode = #tpu.pipeline_mode<synchronous>, transform_indices = @transform_5, window_bounds = array<i64: 1, 1, 128>}, {pipeline_mode = #tpu.pipeline_mode<synchronous>, transform_indices = @transform_6, window_bounds = array<i64: 32, 128>}, {pipeline_mode = #tpu.pipeline_mode<synchronous>, transform_indices = @transform_7, window_bounds = array<i64: 1, 128>}, {transform_indices = @transform_8, window_bounds = array<i64: 8, 128>}]} {
    %c0 = arith.constant 0 : index
    %c0_0 = arith.constant 0 : index
    %0 = vector.load %arg1[%c0, %c0_0] : memref<8x1xi32, #tpu.memory_space<vmem>>, vector<8x1xi32>
    %c0_1 = arith.constant 0 : index
    %c0_2 = arith.constant 0 : index
    %1 = vector.load %arg3[%c0_1, %c0_2] : memref<32x128xbf16, #tpu.memory_space<vmem>>, vector<32x128xbf16>
    %c0_3 = arith.constant 0 : index
    %c0_4 = arith.constant 0 : index
    %2 = vector.load %arg4[%c0_3, %c0_4] : memref<1x128xf32, #tpu.memory_space<vmem>>, vector<1x128xf32>
    %c0_5 = arith.constant 0 : index
    %c0_6 = arith.constant 0 : index
    %c0_7 = arith.constant 0 : index
    %3 = vector.load %arg5[%c0_5, %c0_6, %c0_7] : memref<1x64x128xbf16, #tpu.memory_space<vmem>>, vector<1x64x128xbf16>
    %c0_8 = arith.constant 0 : index
    %c0_9 = arith.constant 0 : index
    %c0_10 = arith.constant 0 : index
    %4 = vector.load %arg6[%c0_8, %c0_9, %c0_10] : memref<1x1x128xf32, #tpu.memory_space<vmem>>, vector<1x1x128xf32>
    %cst = arith.constant 0.000000e+00 : f32
    %5 = vector.broadcast %cst : f32 to vector<8x32xf32>
    %cst_11 = arith.constant 0.000000e+00 : f32
    %6 = vector.broadcast %cst_11 : f32 to vector<8x32xf32>
    %c0_i32 = arith.constant 0 : i32
    %c8_i32 = arith.constant 8 : i32
    %7 = arith.addi %c0_i32, %c8_i32 : i32
    %c1_i32 = arith.constant 1 : i32
    %8:2 = scf.for %arg10 = %c0_i32 to %7 step %c1_i32 iter_args(%arg11 = %5, %arg12 = %6) -> (vector<8x32xf32>, vector<8x32xf32>)  : i32 {
      %16 = vector.broadcast %arg10 : i32 to vector<8x1xi32>
      %17 = arith.cmpi slt, %16, %0 : vector<8x1xi32>
      %18 = arith.extui %17 : vector<8x1xi1> to vector<8x1xi32>
      %19 = arith.sitofp %18 : vector<8x1xi32> to vector<8x1xf32>
      %cst_20 = arith.constant 1.000000e+00 : f32
      %20 = vector.broadcast %cst_20 : f32 to vector<8x1xf32>
      %21 = arith.subf %20, %19 : vector<8x1xf32>
      %22 = arith.index_cast %arg10 : i32 to index
      %c0_21 = arith.constant 0 : index
      %c0_22 = arith.constant 0 : index
      %23 = vector.load %arg2[%22, %c0_21, %c0_22] : memref<8x8x128xf32, #tpu.memory_space<vmem>>, vector<1x8x128xf32>
      %24 = vector.shape_cast %23 : vector<1x8x128xf32> to vector<8x128xf32>
      %25 = arith.truncf %arg11 : vector<8x32xf32> to vector<8x32xbf16>
      %cst_23 = arith.constant dense<0.000000e+00> : vector<8x128xf32>
      %26 = tpu.matmul %25, %1, %cst_23 {dimension_numbers = #tpu.dot_dimension_numbers<[1], [0], [0], [1], [0, 0, 1, 1], [], []>} : vector<8x32xbf16>, vector<32x128xbf16>, vector<8x128xf32> -> vector<8x128xf32>
      %27 = arith.addf %24, %26 : vector<8x128xf32>
      %28 = vector.broadcast %2 : vector<1x128xf32> to vector<8x128xf32>
      %29 = arith.addf %27, %28 : vector<8x128xf32>
      %30 = vector.extract_strided_slice %29 {offsets = [0, 0], sizes = [8, 32], strides = [1, 1]} : vector<8x128xf32> to vector<8x32xf32>
      %31 = arith.negf %30 : vector<8x32xf32>
      %32 = math.exp %31 : vector<8x32xf32>
      %cst_24 = arith.constant 1.000000e+00 : f32
      %33 = vector.broadcast %cst_24 : f32 to vector<8x32xf32>
      %34 = arith.addf %33, %32 : vector<8x32xf32>
      %35 = arith.divf %33, %34 : vector<8x32xf32>
      %36 = vector.extract_strided_slice %29 {offsets = [0, 32], sizes = [8, 32], strides = [1, 1]} : vector<8x128xf32> to vector<8x32xf32>
      %37 = arith.negf %36 : vector<8x32xf32>
      %38 = math.exp %37 : vector<8x32xf32>
      %cst_25 = arith.constant 1.000000e+00 : f32
      %39 = vector.broadcast %cst_25 : f32 to vector<8x32xf32>
      %40 = arith.addf %39, %38 : vector<8x32xf32>
      %41 = arith.divf %39, %40 : vector<8x32xf32>
      %42 = vector.extract_strided_slice %29 {offsets = [0, 64], sizes = [8, 32], strides = [1, 1]} : vector<8x128xf32> to vector<8x32xf32>
      %43 = vector.extract_strided_slice %29 {offsets = [0, 96], sizes = [8, 32], strides = [1, 1]} : vector<8x128xf32> to vector<8x32xf32>
      %44 = arith.mulf %35, %43 : vector<8x32xf32>
      %45 = arith.addf %42, %44 : vector<8x32xf32>
      %46 = math.tanh %45 : vector<8x32xf32>
      %cst_26 = arith.constant 1.000000e+00 : f32
      %47 = vector.broadcast %cst_26 : f32 to vector<8x32xf32>
      %48 = arith.subf %47, %41 : vector<8x32xf32>
      %49 = arith.mulf %48, %46 : vector<8x32xf32>
      %50 = arith.mulf %41, %arg11 : vector<8x32xf32>
      %51 = arith.addf %49, %50 : vector<8x32xf32>
      %52 = vector.broadcast %19 : vector<8x1xf32> to vector<8x32xf32>
      %53 = arith.mulf %52, %51 : vector<8x32xf32>
      %54 = vector.broadcast %21 : vector<8x1xf32> to vector<8x32xf32>
      %55 = arith.mulf %54, %arg11 : vector<8x32xf32>
      %56 = arith.addf %53, %55 : vector<8x32xf32>
      %57 = tpu.concatenate %56, %arg12 in 1 : vector<8x32xf32>, vector<8x32xf32> -> vector<8x64xf32>
      %58 = arith.truncf %57 : vector<8x64xf32> to vector<8x64xbf16>
      %59 = vector.shape_cast %3 : vector<1x64x128xbf16> to vector<64x128xbf16>
      %cst_27 = arith.constant dense<0.000000e+00> : vector<8x128xf32>
      %60 = tpu.matmul %58, %59, %cst_27 {dimension_numbers = #tpu.dot_dimension_numbers<[1], [0], [0], [1], [0, 0, 1, 1], [], []>} : vector<8x64xbf16>, vector<64x128xbf16>, vector<8x128xf32> -> vector<8x128xf32>
      %61 = vector.shape_cast %4 : vector<1x1x128xf32> to vector<1x128xf32>
      %62 = vector.broadcast %61 : vector<1x128xf32> to vector<8x128xf32>
      %63 = arith.addf %60, %62 : vector<8x128xf32>
      %64 = vector.extract_strided_slice %63 {offsets = [0, 0], sizes = [8, 32], strides = [1, 1]} : vector<8x128xf32> to vector<8x32xf32>
      %65 = arith.negf %64 : vector<8x32xf32>
      %66 = math.exp %65 : vector<8x32xf32>
      %cst_28 = arith.constant 1.000000e+00 : f32
      %67 = vector.broadcast %cst_28 : f32 to vector<8x32xf32>
      %68 = arith.addf %67, %66 : vector<8x32xf32>
      %69 = arith.divf %67, %68 : vector<8x32xf32>
      %70 = vector.extract_strided_slice %63 {offsets = [0, 32], sizes = [8, 32], strides = [1, 1]} : vector<8x128xf32> to vector<8x32xf32>
      %71 = arith.negf %70 : vector<8x32xf32>
      %72 = math.exp %71 : vector<8x32xf32>
      %cst_29 = arith.constant 1.000000e+00 : f32
      %73 = vector.broadcast %cst_29 : f32 to vector<8x32xf32>
      %74 = arith.addf %73, %72 : vector<8x32xf32>
      %75 = arith.divf %73, %74 : vector<8x32xf32>
      %76 = vector.extract_strided_slice %63 {offsets = [0, 64], sizes = [8, 32], strides = [1, 1]} : vector<8x128xf32> to vector<8x32xf32>
      %77 = vector.extract_strided_slice %63 {offsets = [0, 96], sizes = [8, 32], strides = [1, 1]} : vector<8x128xf32> to vector<8x32xf32>
      %78 = arith.mulf %69, %77 : vector<8x32xf32>
      %79 = arith.addf %76, %78 : vector<8x32xf32>
      %80 = math.tanh %79 : vector<8x32xf32>
      %cst_30 = arith.constant 1.000000e+00 : f32
      %81 = vector.broadcast %cst_30 : f32 to vector<8x32xf32>
      %82 = arith.subf %81, %75 : vector<8x32xf32>
      %83 = arith.mulf %82, %80 : vector<8x32xf32>
      %84 = arith.mulf %75, %arg12 : vector<8x32xf32>
      %85 = arith.addf %83, %84 : vector<8x32xf32>
      %86 = vector.broadcast %19 : vector<8x1xf32> to vector<8x32xf32>
      %87 = arith.mulf %86, %85 : vector<8x32xf32>
      %88 = vector.broadcast %21 : vector<8x1xf32> to vector<8x32xf32>
      %89 = arith.mulf %88, %arg12 : vector<8x32xf32>
      %90 = arith.addf %87, %89 : vector<8x32xf32>
      scf.yield %56, %90 : vector<8x32xf32>, vector<8x32xf32>
    }
    %c8_i32_12 = arith.constant 8 : i32
    %9 = arith.truncf %8#1 : vector<8x32xf32> to vector<8x32xbf16>
    %c0_13 = arith.constant 0 : index
    %c0_14 = arith.constant 0 : index
    %10 = vector.load %arg7[%c0_13, %c0_14] : memref<32x128xbf16, #tpu.memory_space<vmem>>, vector<32x128xbf16>
    %cst_15 = arith.constant dense<0.000000e+00> : vector<8x128xf32>
    %11 = tpu.matmul %9, %10, %cst_15 {dimension_numbers = #tpu.dot_dimension_numbers<[1], [0], [0], [1], [0, 0, 1, 1], [], []>} : vector<8x32xbf16>, vector<32x128xbf16>, vector<8x128xf32> -> vector<8x128xf32>
    %c0_16 = arith.constant 0 : index
    %c0_17 = arith.constant 0 : index
    %12 = vector.load %arg8[%c0_16, %c0_17] : memref<1x128xf32, #tpu.memory_space<vmem>>, vector<1x128xf32>
    %13 = vector.broadcast %12 : vector<1x128xf32> to vector<8x128xf32>
    %14 = arith.addf %11, %13 : vector<8x128xf32>
    %c0_18 = arith.constant 0 : index
    %c0_19 = arith.constant 0 : index
    %15 = vector.load %arg9[%c0_18, %c0_19] : memref<8x128xf32, #tpu.memory_space<vmem>>, vector<8x128xf32>
    tpu.vector_store %arg9[%c0_18, %c0_19], %14 {strides = array<i32>} : memref<8x128xf32, #tpu.memory_space<vmem>>, vector<8x128xf32>,
    return
  }
  func.func @transform_0(%arg0: i32) -> (i32, i32) {
    %c0_i32 = arith.constant 0 : i32
    %c0_i32_0 = arith.constant 0 : i32
    return %arg0, %c0_i32 : i32, i32
  }
  func.func @transform_1(%arg0: i32) -> (i32, i32, i32) {
    %c0_i32 = arith.constant 0 : i32
    %c0_i32_0 = arith.constant 0 : i32
    %c0_i32_1 = arith.constant 0 : i32
    return %c0_i32, %arg0, %c0_i32_0 : i32, i32, i32
  }
  func.func @transform_2(%arg0: i32) -> (i32, i32) {
    %c0_i32 = arith.constant 0 : i32
    %c0_i32_0 = arith.constant 0 : i32
    %c0_i32_1 = arith.constant 0 : i32
    return %c0_i32, %c0_i32_0 : i32, i32
  }
  func.func @transform_3(%arg0: i32) -> (i32, i32) {
    %c0_i32 = arith.constant 0 : i32
    %c0_i32_0 = arith.constant 0 : i32
    %c0_i32_1 = arith.constant 0 : i32
    return %c0_i32, %c0_i32_0 : i32, i32
  }
  func.func @transform_4(%arg0: i32) -> (i32, i32, i32) {
    %c0_i32 = arith.constant 0 : i32
    %c0_i32_0 = arith.constant 0 : i32
    %c0_i32_1 = arith.constant 0 : i32
    %c0_i32_2 = arith.constant 0 : i32
    return %c0_i32, %c0_i32_0, %c0_i32_1 : i32, i32, i32
  }
  func.func @transform_5(%arg0: i32) -> (i32, i32, i32) {
    %c0_i32 = arith.constant 0 : i32
    %c0_i32_0 = arith.constant 0 : i32
    %c0_i32_1 = arith.constant 0 : i32
    %c0_i32_2 = arith.constant 0 : i32
    return %c0_i32, %c0_i32_0, %c0_i32_1 : i32, i32, i32
  }
  func.func @transform_6(%arg0: i32) -> (i32, i32) {
    %c0_i32 = arith.constant 0 : i32
    %c0_i32_0 = arith.constant 0 : i32
    %c0_i32_1 = arith.constant 0 : i32
    return %c0_i32, %c0_i32_0 : i32, i32
  }
  func.func @transform_7(%arg0: i32) -> (i32, i32) {
    %c0_i32 = arith.constant 0 : i32
    %c0_i32_0 = arith.constant 0 : i32
    %c0_i32_1 = arith.constant 0 : i32
    return %c0_i32, %c0_i32_0 : i32, i32
  }
  func.func @transform_8(%arg0: i32) -> (i32, i32) {
    %c0_i32 = arith.constant 0 : i32
    %c0_i32_0 = arith.constant 0 : i32
    return %arg0, %c0_i32 : i32, i32
  }
}

</mosaic_0001>

<llo_original>
// kernel: tpu_custom_call.1
$region0: #{tpu_custom_call.1}
  #allocation0 [shape = 'u32[]', space=smem, size = 0x4, offset = 0x4, fixed_abs, tag = 'smem constant byte address 0x4 - core index']
  #allocation1 [shape = 'u32[144,128]{1,0:T(1,128)}', space=vmem, size = 0x12000, scoped, tag = 'internal scratch']
  %s0 = inlined_call_operand.vmem [shape: s32[8,1], index: 0, kind: input, shape index: {}]
  %s1 = inlined_call_operand.hbm [shape: f32[8,8,128], index: 1, kind: input, shape index: {}]
  %s2 = inlined_call_operand.vmem [shape: bf16[32,128], index: 2, kind: input, shape index: {}]
  %s3 = inlined_call_operand.vmem [shape: f32[1,128], index: 3, kind: input, shape index: {}]
  %s4 = inlined_call_operand.hbm [shape: bf16[1,64,128], index: 4, kind: input, shape index: {}]
  %s5 = inlined_call_operand.vmem [shape: f32[1,1,128], index: 5, kind: input, shape index: {}]
  %s6 = inlined_call_operand.hbm [shape: bf16[32,128], index: 6, kind: input, shape index: {}]
  %s7 = inlined_call_operand.vmem [shape: f32[1,128], index: 7, kind: input, shape index: {}]
  %s8 = inlined_call_operand.hbm [shape: f32[8,128], index: 8, kind: output, shape index: {}]
  %s9 = sld [smem:[#allocation0]]
  $region61: #{tpu_custom_call.1} parent=0
    _
  %s11 = ssub.s32 1, %s9
  %s12 = scalar_select 0, %s11, %s9
  $region1: #{tpu_custom_call.1} parent=0
    #allocation2 [shape = 'u8[32768]{0}', space=vmem, size = 0x8000, scoped, tag = 'input window, operand 1, single buffered']
    #allocation3 [shape = 's32[1]{0}', space=sflag, size = 0x4, scoped, tag = 'scoped memory for tpu_custom_call.1']
    #allocation4 [shape = 's32[1]{0}', space=sflag, size = 0x4, scoped, tag = 'scoped memory for tpu_custom_call.1']
    #allocation5 [shape = 'u8[16384]{0}', space=vmem, size = 0x4000, scoped, tag = 'input window, operand 4, single buffered']
    #allocation6 [shape = 's32[1]{0}', space=sflag, size = 0x4, scoped, tag = 'scoped memory for tpu_custom_call.1']
    #allocation7 [shape = 'u8[8192]{0}', space=vmem, size = 0x2000, scoped, tag = 'input window, operand 6, single buffered']
    #allocation8 [shape = 'u8[4096]{0}', space=vmem, size = 0x1000, scoped, tag = 'output window, operand 0, single buffered']
    %13 = vsyncpa [#allocation3], 0
    %14 = vsyncpa [#allocation6], 0
    %15 = vsyncpa [#allocation4], 0
    // Predicated region
    $region2: #{tpu_custom_call.1} parent=1 // pred_check
      _
    $region3: #{tpu_custom_call.1} parent=1 // pred_check_branch
      %17 = sbr.rel (0) target = $region5
    $region4: #{tpu_custom_call.1} parent=1 // pred_region
      _
    $region5: #{tpu_custom_call.1} parent=1 // pred_fallthru
      _
    // Predicated region
    $region6: #{tpu_custom_call.1} parent=1 // pred_check
      _
    $region7: #{tpu_custom_call.1} parent=1 // pred_check_branch
      %19 = sbr.rel (0) target = $region9
    $region8: #{tpu_custom_call.1} parent=1 // pred_region
      %s21 = ssub.s32 1024, 1024
      %22 = vsyncadd [#allocation3], %s21
      %s23 = sshll.u32 [#allocation2], 4
      %s24 = int_to_ptr.vmem [resolvable:$true] %s23
      %29 = dma.hbm_to_vmem [thread:$0]  %s1, 1024, %s24, [#allocation3], 128, 128, 8
    $region9: #{tpu_custom_call.1} parent=1 // pred_fallthru
      _
    // Predicated region
    $region10: #{tpu_custom_call.1} parent=1 // pred_check
      _
    $region11: #{tpu_custom_call.1} parent=1 // pred_check_branch
      %31 = sbr.rel (0) target = $region13
    $region12: #{tpu_custom_call.1} parent=1 // pred_region
      _
    $region13: #{tpu_custom_call.1} parent=1 // pred_fallthru
      _
    // Predicated region
    $region14: #{tpu_custom_call.1} parent=1 // pred_check
      _
    $region15: #{tpu_custom_call.1} parent=1 // pred_check_branch
      %33 = sbr.rel (0) target = $region17
    $region16: #{tpu_custom_call.1} parent=1 // pred_region
      _
    $region17: #{tpu_custom_call.1} parent=1 // pred_fallthru
      _
    // Predicated region
    $region18: #{tpu_custom_call.1} parent=1 // pred_check
      _
    $region19: #{tpu_custom_call.1} parent=1 // pred_check_branch
      %35 = sbr.rel (0) target = $region21
    $region20: #{tpu_custom_call.1} parent=1 // pred_region
      %s37 = ssub.s32 512, 512
      %38 = vsyncadd [#allocation6], %s37
      %s39 = sshll.u32 [#allocation5], 4
      %s40 = int_to_ptr.vmem [resolvable:$true] %s39
      %45 = dma.hbm_to_vmem [thread:$0]  %s4, 512, %s40, [#allocation6], 64, 64, 4
    $region21: #{tpu_custom_call.1} parent=1 // pred_fallthru
      _
    // Predicated region
    $region22: #{tpu_custom_call.1} parent=1 // pred_check
      _
    $region23: #{tpu_custom_call.1} parent=1 // pred_check_branch
      %47 = sbr.rel (0) target = $region25
    $region24: #{tpu_custom_call.1} parent=1 // pred_region
      _
    $region25: #{tpu_custom_call.1} parent=1 // pred_fallthru
      _
    // Predicated region
    $region26: #{tpu_custom_call.1} parent=1 // pred_check
      _
    $region27: #{tpu_custom_call.1} parent=1 // pred_check_branch
      %49 = sbr.rel (0) target = $region29
    $region28: #{tpu_custom_call.1} parent=1 // pred_region
      %s51 = ssub.s32 256, 256
      %52 = vsyncadd [#allocation6], %s51
      %s53 = sshll.u32 [#allocation7], 4
      %s54 = int_to_ptr.vmem [resolvable:$true] %s53
      %59 = dma.hbm_to_vmem [thread:$0]  %s6, 256, %s54, [#allocation6], 64, 64, 4
    $region29: #{tpu_custom_call.1} parent=1 // pred_fallthru
      _
    // Predicated region
    $region30: #{tpu_custom_call.1} parent=1 // pred_check
      _
    $region31: #{tpu_custom_call.1} parent=1 // pred_check_branch
      %61 = sbr.rel (0) target = $region33
    $region32: #{tpu_custom_call.1} parent=1 // pred_region
      _
    $region33: #{tpu_custom_call.1} parent=1 // pred_fallthru
      _
    // Predicated region
    $region34: #{tpu_custom_call.1} parent=1 // pred_check
      _
    $region35: #{tpu_custom_call.1} parent=1 // pred_check_branch
      %63 = sbr.rel (0) target = $region37
    $region36: #{tpu_custom_call.1} parent=1 // pred_region
      %64 = dma.done [#allocation3], 1024
    $region37: #{tpu_custom_call.1} parent=1 // pred_fallthru
      _
    // Predicated region
    $region38: #{tpu_custom_call.1} parent=1 // pred_check
      _
    $region39: #{tpu_custom_call.1} parent=1 // pred_check_branch
      %66 = sbr.rel (0) target = $region41
    $region40: #{tpu_custom_call.1} parent=1 // pred_region
      %67 = dma.done [#allocation6], 512
    $region41: #{tpu_custom_call.1} parent=1 // pred_fallthru
      _
    // Predicated region
    $region42: #{tpu_custom_call.1} parent=1 // pred_check
      _
    $region43: #{tpu_custom_call.1} parent=1 // pred_check_branch
      %69 = sbr.rel (0) target = $region45
    $region44: #{tpu_custom_call.1} parent=1 // pred_region
      %70 = dma.done [#allocation6], 256
    $region45: #{tpu_custom_call.1} parent=1 // pred_fallthru
      _
    %v72 = vld [vmem:[%s0] sm:$0xff]
    %v73 = vld [vmem:[%s2] sm:$0xf]
    %v74 = vld [vmem:[%s2 + $0x4] sm:$0xf]
    %v75 = vld [vmem:[%s2 + $0x8] sm:$0xf]
    %v76 = vld [vmem:[%s2 + $0xc] sm:$0xf]
    %v77 = vld [vmem:[%s3] sm:$0x1]
    %v78 = vld [vmem:[#allocation5] sm:$0xf]
    %v79 = vld [vmem:[#allocation5 + $0x4] sm:$0xf]
    %v80 = vld [vmem:[#allocation5 + $0x8] sm:$0xf]
    %v81 = vld [vmem:[#allocation5 + $0xc] sm:$0xf]
    %v82 = vld [vmem:[#allocation5 + $0x10] sm:$0xf]
    %v83 = vld [vmem:[#allocation5 + $0x14] sm:$0xf]
    %v84 = vld [vmem:[#allocation5 + $0x18] sm:$0xf]
    %v85 = vld [vmem:[#allocation5 + $0x1c] sm:$0xf]
    %v86 = vld [vmem:[%s5] sm:$0x1]
    loop: start=0, step=1, limit=8
    $region46: #{tpu_custom_call.1} parent=1 // loop_pre_header
      _
    $region47: #{tpu_custom_call.1} parent=1 // loop_header
      %s88 = sphi 0, %s92
      %p89 = scmp.ge.s32.totalorder %s88, 8
      %v93 = vphi 0.0, %v208
      %v94 = vphi 0.0, %v316
    $region48: #{tpu_custom_call.1} parent=1 // loop_header_branch
      %91 = sbr.rel (%p89) target = $region52
    $region49: #{tpu_custom_call.1} parent=1 // loop_body
      %v95 = vstv %s88
      %vm96 = vcmp.lt.s32.totalorder %v95, %v72
      %v97 = vsel %vm96, 1, 0
      %v98 = vcvt.s32.f32 %v97
      %v99 = vsub.f32 1.0, %v98
      %s100 = smul.u32 %s88, 8
      %s101 = scalar_lea.vmem [#allocation2], %s100
      %v102 = vld [vmem:[%s101] sm:$0xff]
      %v103 = vpack.c.bf16 %v93, %v93
      %105 = vrot.lane.b32.xlu0 %v103, 96
      %v106 = vpop.permute.xlu0 %105
      %v111 = vunpack.c.l.b16 %v73
      %v112 = vunpack.c.l.b16 %v74
      %v113 = vunpack.c.l.b16 %v75
      %v114 = vunpack.c.l.b16 %v76
      %v115 = vpack.c.b16 %v112, %v111
      %v116 = vpack.c.b16 %v114, %v113
      %vm119 = vcmask 261120
      %v121 = vsel %vm119, %v106, 0
      %123 = vmatprep.subr.bf16.mxu0 0
      %124 = vmatpush1.bf16.msra.mxu0 %v115
      %125 = vmatprep.subr.bf16.mxu0 0
      %126 = vmatpush1.bf16.msra.mxu0 %v116
      %127 = vmatprep.subr.bf16.mxu0 0
      %128 = vmatpush1.bf16.msra.mxu0 0
      %129 = vmatprep.subr.bf16.mxu0 0
      %130 = vmatpush1.bf16.msra.mxu0 0
      %131 = vmatprep.subr.bf16.mxu0 0
      %132 = vmatpush1.bf16.msra.mxu0 0
      %133 = vmatprep.subr.bf16.mxu0 0
      %134 = vmatpush1.bf16.msra.mxu0 0
      %135 = vmatprep.subr.bf16.mxu0 0
      %136 = vmatpush1.bf16.msra.mxu0 0
      %137 = vmatprep.subr.bf16.mxu0 0
      %138 = vmatpush1.bf16.msra.mxu0 0
      %139 = vmatprep.subr.bf16.mxu0 0
      %140 = vmatpush1.bf16.msra.mxu0 0
      %141 = vmatprep.subr.bf16.mxu0 0
      %142 = vmatpush1.bf16.msra.mxu0 0
      %143 = vmatprep.subr.bf16.mxu0 0
      %144 = vmatpush1.bf16.msra.mxu0 0
      %145 = vmatprep.subr.bf16.mxu0 0
      %146 = vmatpush1.bf16.msra.mxu0 0
      %147 = vmatprep.subr.bf16.mxu0 0
      %148 = vmatpush1.bf16.msra.mxu0 0
      %149 = vmatprep.subr.bf16.mxu0 0
      %150 = vmatpush1.bf16.msra.mxu0 0
      %151 = vmatprep.subr.bf16.mxu0 0
      %152 = vmatpush1.bf16.msra.mxu0 0
      %153 = vmatprep.subr.bf16.mxu0 0
      %154 = vmatpush1.bf16.msra.mxu0 0
      %155 = vmatprep.mubr.bf16.mxu0 0
      %156 = vmatmul.mubr.bf16.gmra.mrb[0].mxu0 %v121
      %v157 = vpop.f32.mrb[0].mxu0
      %v158 = vadd.f32 0.0, %v157
      %v159 = vpop.f32.mrb[0].mxu0
      %v160 = vpop.f32.mrb[0].mxu0
      %v161 = vpop.f32.mrb[0].mxu0
      %162 = vdwg.mxu0
      %v163 = vadd.f32 %v102, %v158
      %v165 = vlaneseq
      %v166 = vshrl.u32 %v165, 7
      %v167 = vsub.s32 0, %v166
      %v168 = vrot.slane %v77, %v167
      %v170 = vadd.f32 %v163, %v168
      %v171 = vxor.u32 %v170, 2147483648
      %v172 = vmul.f32 %v171, 1.442695
      %v173 = vpow.pop %v172
      %v174 = vadd.f32 %v173, 1.0
      %v175 = vrcp.pop %v174
      %v176 = vmul.f32 1.0, %v175
      %178 = vrot.lane.b32.xlu0 %v170, 32
      %v179 = vpop.permute.xlu0 %178
      %v181 = vmul.f32 %v176, %v179
      %183 = vrot.lane.b32.xlu0 %v181, 64
      %v184 = vpop.permute.xlu0 %183
      %v186 = vadd.f32 %v170, %v184
      %v187 = vtanh.pop %v186
      %v188 = vsub.f32 1.0, %v176
      %190 = vrot.lane.b32.xlu0 %v187, 96
      %v191 = vpop.permute.xlu0 %190
      %v193 = vmul.f32 %v188, %v191
      %v194 = vmul.f32 %v176, %v93
      %v195 = vadd.f32 %v193, %v194
      %197 = vset.pattern.permute.xlu0 0
      %198 = vperm.xlu0 %197, %v98
      %v199 = vpop.permute.xlu0 %198
      %v201 = vmul.f32 %v199, %v195
      %203 = vset.pattern.permute.xlu0 0
      %204 = vperm.xlu0 %203, %v99
      %v205 = vpop.permute.xlu0 %204
      %v207 = vmul.f32 %v205, %v93
      %v208 = vadd.f32 %v201, %v207
      %210 = vrot.lane.b32.xlu0 %v208, 96
      %v211 = vpop.permute.xlu0 %210
      %v213 = vsel %vm119, %v211, %v94
      %v214 = vpack.c.bf16 %v213, %v213
      %v216 = vlaneseq
      %v217 = vshrl.u32 %v216, 7
      %v218 = vsub.s32 0, %v217
      %v219 = vrot.slane %v86, %v218
      %v229 = vunpack.c.l.b16 %v78
      %v230 = vunpack.c.l.b16 %v79
      %v231 = vunpack.c.l.b16 %v80
      %v232 = vunpack.c.l.b16 %v81
      %v233 = vunpack.c.l.b16 %v82
      %v234 = vunpack.c.l.b16 %v83
      %v235 = vunpack.c.l.b16 %v84
      %v236 = vunpack.c.l.b16 %v85
      %v237 = vpack.c.b16 %v230, %v229
      %v238 = vpack.c.b16 %v232, %v231
      %v239 = vpack.c.b16 %v234, %v233
      %v240 = vpack.c.b16 %v236, %v235
      %vm245 = vcmask 523264
      %v247 = vsel %vm245, %v214, 0
      %249 = vmatprep.subr.bf16.mxu0 0
      %250 = vmatpush1.bf16.msra.mxu0 %v237
      %251 = vmatprep.subr.bf16.mxu0 0
      %252 = vmatpush1.bf16.msra.mxu0 %v238
      %253 = vmatprep.subr.bf16.mxu0 0
      %254 = vmatpush1.bf16.msra.mxu0 %v239
      %255 = vmatprep.subr.bf16.mxu0 0
      %256 = vmatpush1.bf16.msra.mxu0 %v240
      %257 = vmatprep.subr.bf16.mxu0 0
      %258 = vmatpush1.bf16.msra.mxu0 0
      %259 = vmatprep.subr.bf16.mxu0 0
      %260 = vmatpush1.bf16.msra.mxu0 0
      %261 = vmatprep.subr.bf16.mxu0 0
      %262 = vmatpush1.bf16.msra.mxu0 0
      %263 = vmatprep.subr.bf16.mxu0 0
      %264 = vmatpush1.bf16.msra.mxu0 0
      %265 = vmatprep.subr.bf16.mxu0 0
      %266 = vmatpush1.bf16.msra.mxu0 0
      %267 = vmatprep.subr.bf16.mxu0 0
      %268 = vmatpush1.bf16.msra.mxu0 0
      %269 = vmatprep.subr.bf16.mxu0 0
      %270 = vmatpush1.bf16.msra.mxu0 0
      %271 = vmatprep.subr.bf16.mxu0 0
      %272 = vmatpush1.bf16.msra.mxu0 0
      %273 = vmatprep.subr.bf16.mxu0 0
      %274 = vmatpush1.bf16.msra.mxu0 0
      %275 = vmatprep.subr.bf16.mxu0 0
      %276 = vmatpush1.bf16.msra.mxu0 0
      %277 = vmatprep.subr.bf16.mxu0 0
      %278 = vmatpush1.bf16.msra.mxu0 0
      %279 = vmatprep.subr.bf16.mxu0 0
      %280 = vmatpush1.bf16.msra.mxu0 0
      %281 = vmatprep.mubr.bf16.mxu0 0
      %282 = vmatmul.mubr.bf16.gmra.mrb[0].mxu0 %v247
      %v283 = vpop.f32.mrb[0].mxu0
      %v284 = vadd.f32 %v219, %v283
      %v285 = vpop.f32.mrb[0].mxu0
      %v286 = vpop.f32.mrb[0].mxu0
      %v287 = vpop.f32.mrb[0].mxu0
      %288 = vdwg.mxu0
      %v289 = vxor.u32 %v284, 2147483648
      %v290 = vmul.f32 %v289, 1.442695
      %v291 = vpow.pop %v290
      %v292 = vadd.f32 %v291, 1.0
      %v293 = vrcp.pop %v292
      %v294 = vmul.f32 1.0, %v293
      %296 = vrot.lane.b32.xlu0 %v284, 32
      %v297 = vpop.permute.xlu0 %296
      %v299 = vmul.f32 %v294, %v297
      %301 = vrot.lane.b32.xlu0 %v299, 64
      %v302 = vpop.permute.xlu0 %301
      %v304 = vadd.f32 %v284, %v302
      %v305 = vtanh.pop %v304
      %v306 = vsub.f32 1.0, %v294
      %308 = vrot.lane.b32.xlu0 %v305, 96
      %v309 = vpop.permute.xlu0 %308
      %v311 = vmul.f32 %v306, %v309
      %v312 = vmul.f32 %v294, %v94
      %v313 = vadd.f32 %v311, %v312
      %v314 = vmul.f32 %v199, %v313
      %v315 = vmul.f32 %v205, %v94
      %v316 = vadd.f32 %v314, %v315
    $region50: #{tpu_custom_call.1} parent=1 // loop_footer
      %s92 = sadd.s32 1, %s88
    $region51: #{tpu_custom_call.1} parent=1 // loop_footer_branch
      %87 = sbr.rel target = $region47
    $region52: #{tpu_custom_call.1} parent=1 // loop_exit
      _
    %v317 = vpack.c.bf16 %v94, %v94
    %v318 = vld [vmem:[#allocation7] sm:$0xf]
    %v319 = vld [vmem:[#allocation7 + $0x4] sm:$0xf]
    %v320 = vld [vmem:[#allocation7 + $0x8] sm:$0xf]
    %v321 = vld [vmem:[#allocation7 + $0xc] sm:$0xf]
    %v322 = vld [vmem:[%s7] sm:$0x1]
    %v324 = vlaneseq
    %v325 = vshrl.u32 %v324, 7
    %v326 = vsub.s32 0, %v325
    %v327 = vrot.slane %v322, %v326
    %330 = vrot.lane.b32.xlu0 %v317, 96
    %v331 = vpop.permute.xlu0 %330
    %v336 = vunpack.c.l.b16 %v318
    %v337 = vunpack.c.l.b16 %v319
    %v338 = vunpack.c.l.b16 %v320
    %v339 = vunpack.c.l.b16 %v321
    %v340 = vpack.c.b16 %v337, %v336
    %v341 = vpack.c.b16 %v339, %v338
    %vm344 = vcmask 261120
    %v346 = vsel %vm344, %v331, 0
    %348 = vmatprep.subr.bf16.mxu0 0
    %349 = vmatpush1.bf16.msra.mxu0 %v340
    %350 = vmatprep.subr.bf16.mxu0 0
    %351 = vmatpush1.bf16.msra.mxu0 %v341
    %352 = vmatprep.subr.bf16.mxu0 0
    %353 = vmatpush1.bf16.msra.mxu0 0
    %354 = vmatprep.subr.bf16.mxu0 0
    %355 = vmatpush1.bf16.msra.mxu0 0
    %356 = vmatprep.subr.bf16.mxu0 0
    %357 = vmatpush1.bf16.msra.mxu0 0
    %358 = vmatprep.subr.bf16.mxu0 0
    %359 = vmatpush1.bf16.msra.mxu0 0
    %360 = vmatprep.subr.bf16.mxu0 0
    %361 = vmatpush1.bf16.msra.mxu0 0
    %362 = vmatprep.subr.bf16.mxu0 0
    %363 = vmatpush1.bf16.msra.mxu0 0
    %364 = vmatprep.subr.bf16.mxu0 0
    %365 = vmatpush1.bf16.msra.mxu0 0
    %366 = vmatprep.subr.bf16.mxu0 0
    %367 = vmatpush1.bf16.msra.mxu0 0
    %368 = vmatprep.subr.bf16.mxu0 0
    %369 = vmatpush1.bf16.msra.mxu0 0
    %370 = vmatprep.subr.bf16.mxu0 0
    %371 = vmatpush1.bf16.msra.mxu0 0
    %372 = vmatprep.subr.bf16.mxu0 0
    %373 = vmatpush1.bf16.msra.mxu0 0
    %374 = vmatprep.subr.bf16.mxu0 0
    %375 = vmatpush1.bf16.msra.mxu0 0
    %376 = vmatprep.subr.bf16.mxu0 0
    %377 = vmatpush1.bf16.msra.mxu0 0
    %378 = vmatprep.subr.bf16.mxu0 0
    %379 = vmatpush1.bf16.msra.mxu0 0
    %380 = vmatprep.mubr.bf16.mxu0 0
    %381 = vmatmul.mubr.bf16.gmra.mrb[0].mxu0 %v346
    %v382 = vpop.f32.mrb[0].mxu0
    %v383 = vadd.f32 %v327, %v382
    %v384 = vpop.f32.mrb[0].mxu0
    %v385 = vpop.f32.mrb[0].mxu0
    %v386 = vpop.f32.mrb[0].mxu0
    %387 = vdwg.mxu0
    %388 = vst [vmem:[#allocation8] sm:$0xff] %v383
    // Predicated region
    $region53: #{tpu_custom_call.1} parent=1 // pred_check
      _
    $region54: #{tpu_custom_call.1} parent=1 // pred_check_branch
      %390 = sbr.rel (0) target = $region56
    $region55: #{tpu_custom_call.1} parent=1 // pred_region
      %s392 = ssub.s32 128, 128
      %393 = vsyncadd [#allocation4], %s392
      %s395 = sshll.u32 [#allocation8], 4
      %s396 = int_to_ptr.vmem [resolvable:$true] %s395
      %398 = dma.vmem_to_hbm [thread:$0]  %s396, 128, %s8, [#allocation4]
    $region56: #{tpu_custom_call.1} parent=1 // pred_fallthru
      _
    // Predicated region
    $region57: #{tpu_custom_call.1} parent=1 // pred_check
      _
    $region58: #{tpu_custom_call.1} parent=1 // pred_check_branch
      %400 = sbr.rel (0) target = $region60
    $region59: #{tpu_custom_call.1} parent=1 // pred_region
      %401 = dma.done [#allocation4], 128
    $region60: #{tpu_custom_call.1} parent=1 // pred_fallthru
      _
    %402 = vsyncpa [#allocation3], 1
    %403 = vsyncpa [#allocation6], 1
    %404 = vsyncpa [#allocation4], 1

</llo_original>
